<compile_context>
chip_gen: v6e
topology: v6e:2x2x1
jax: 0.10.0
libtpu: 0.0.40
codegen_flags: <defaults>
</compile_context>

<pallas_src>
import functools
import math
from typing import NamedTuple

import jax
import jax.numpy as jnp
from jax.experimental import pallas as pl
from jax.experimental.pallas import tpu as pltpu

_LANE = 128
_MIB = 1024 * 1024


def _round_up(x: int, m: int) -> int:
    return ((x + m - 1) // m) * m


def _pad2d(a, rows, cols):
    r, c = a.shape
    return jnp.pad(a, ((0, rows - r), (0, cols - c)))


def _default_vmem_limit_bytes() -> int:
    """Generation-aware scoped-VMEM limit: ~108 MiB on 128-MiB parts (v5e/v6e),
    ~48 MiB on 64-MiB parts (v7x).  Falls back to a safe 48 MiB."""
    cap = 64 * _MIB
    try:
        info = pltpu.get_tpu_info()
        cap = int(getattr(info, "vmem_capacity_bytes", cap)) or cap
    except Exception:
        pass
    return int(min(cap - 16 * _MIB, 0.85 * cap))


def _pick_tiles(n: int, vmem_limit_bytes: int):
    """(tile_m, tile_k) for the adj stream.  The reduction (K) side grows most;
    128-MiB generations get 4096-wide K tiles, v7x gets 2048."""
    n0 = _round_up(max(n, 1), _LANE)
    tm_target = 1024
    tk_target = 4096 if vmem_limit_bytes >= 80 * _MIB else 2048
    if n0 <= tm_target:
        return n0, n0                                # single tile
    if n0 <= tk_target:
        # Whole reduction dim in one K step; tile_m = largest divisor of n0
        # (in 128-lane units) not exceeding tm_target, which also keeps >= 2
        # row tiles so both v7x TensorCores get work on the "parallel" axis.
        u = n0 // _LANE
        um = tm_target // _LANE
        tm_u = max(d for d in range(1, um + 1) if u % d == 0)
        return tm_u * _LANE, n0
    return tm_target, tk_target


class PreparedAdj(NamedTuple):
    """Padded (and optionally int8-quantized) adjacency plus its tiling.
    Build once outside the training/inference step to hoist the full N x N
    pad + dtype conversion off every forward call."""
    values: jax.Array      # (n_p, n_p), storage dtype (int8 by default)
    inv_scale: jax.Array   # f32 scalar; adj ~= inv_scale * values
    n: int
    n_p: int
    tile_m: int
    tile_k: int


def prepare_adj(adj, *, adj_dtype=jnp.int8, vmem_limit_bytes=None,
                tile_m=None, tile_k=None) -> PreparedAdj:
    n = adj.shape[0]
    assert adj.shape == (n, n), "adj must be square"
    if vmem_limit_bytes is None:
        vmem_limit_bytes = _default_vmem_limit_bytes()
    tm_auto, tk_auto = _pick_tiles(n, vmem_limit_bytes)
    tile_m = tm_auto if tile_m is None else tile_m
    tile_k = tk_auto if tile_k is None else tile_k
    assert tile_m % _LANE == 0 and tile_k % _LANE == 0
    n_p = _round_up(n, math.lcm(tile_m, tile_k))

    adj_f = _pad2d(jnp.asarray(adj, jnp.float32), n_p, n_p)
    if jnp.dtype(adj_dtype) == jnp.dtype(jnp.int8):
        # Symmetric global-scale quantization; row-normalized adj is in [0, 1]
        # so a single scale loses <= 0.5/127 of amax per nonzero entry.
        amax = jnp.max(jnp.abs(adj_f))
        safe = jnp.maximum(amax, jnp.float32(1e-30))
        q = jnp.clip(jnp.round(adj_f * (127.0 / safe)), -127.0, 127.0)
        values = q.astype(jnp.int8)
        inv_scale = jnp.where(amax > 0, safe / 127.0, 1.0).astype(jnp.float32)
    else:
        values = adj_f.astype(adj_dtype)
        inv_scale = jnp.asarray(1.0, jnp.float32)
    return PreparedAdj(values, inv_scale, n, n_p, tile_m, tile_k)


# ------------------------------- kernels -------------------------------------


def _linear_kernel(x_ref, wt_ref, b_ref, out_ref):
    """out = x @ W^T + b for one (TM, F_in) row tile; W^T / b VMEM-resident."""
    acc = jnp.dot(x_ref[...], wt_ref[...], preferred_element_type=jnp.float32)
    out_ref[...] = (acc + b_ref[...]).astype(out_ref.dtype)


def _rhs_tile(s_ref, k, tile_k, rhs_resident):
    """Current K-slice of the aggregation RHS.  If the RHS is VMEM-resident
    (constant-index BlockSpec over all rows), slice it in-kernel; otherwise the
    pipeline already delivered the (tile_k, F) block."""
    if rhs_resident:
        start = pl.multiple_of(k * tile_k, tile_k)
        return s_ref[pl.ds(start, tile_k), :]
    return s_ref[...]


def _spmm_fused_kernel(adj_ref, s_ref, wt_ref, b_ref, out_ref, acc_ref, *,
                       use_relu, tile_k, rhs_resident):
    """out = act(adj @ s) @ W^T + b.

    adj is streamed in (TM, TK) tiles over grid axis 1 (K reduction) into an
    f32 accumulator; the int8 adj tile is widened on-chip just before the MXU
    dot.  Activation + the tiny layer-2 projection run once per row tile in the
    finalize branch so the aggregated h never round-trips HBM."""
    k = pl.program_id(1)

    @pl.when(k == 0)
    def _init():
        acc_ref[...] = jnp.zeros_like(acc_ref)

    s = _rhs_tile(s_ref, k, tile_k, rhs_resident)
    acc_ref[...] += jnp.dot(adj_ref[...].astype(s.dtype), s,
                            preferred_element_type=jnp.float32)

    @pl.when(k == pl.num_programs(1) - 1)
    def _finalize():
        h = acc_ref[...]
        if use_relu:
            h = jnp.maximum(h, 0.0)
        # TODO(synk): F.dropout(training=True) is stochastic; eval-mode identity here.
        s2 = jnp.dot(h.astype(wt_ref.dtype), wt_ref[...],
                     preferred_element_type=jnp.float32)
        out_ref[...] = (s2 + b_ref[...]).astype(out_ref.dtype)


def _spmm_kernel(adj_ref, s_ref, out_ref, acc_ref, *, tile_k, rhs_resident):
    """out = adj @ s with the same tiling/accumulation scheme as above."""
    k = pl.program_id(1)

    @pl.when(k == 0)
    def _init():
        acc_ref[...] = jnp.zeros_like(acc_ref)

    s = _rhs_tile(s_ref, k, tile_k, rhs_resident)
    acc_ref[...] += jnp.dot(adj_ref[...].astype(s.dtype), s,
                            preferred_element_type=jnp.float32)

    @pl.when(k == pl.num_programs(1) - 1)
    def _finalize():
        out_ref[...] = acc_ref[...].astype(out_ref.dtype)


# ------------------------------- wrapper --------------------------------------


def gcn_forward(x, adj, w1, b1, w2, b2, *, use_relu=True,
                compute_dtype=jnp.bfloat16, adj_dtype=None,
                rhs_resident=None, vmem_limit_bytes=None):
    """x: (N, nfeat); adj: dense (N, N) array or a PreparedAdj; w1: (nhid, nfeat),
    b1: (nhid,), w2: (nclass, nhid), b2: (nclass,).  Returns (N, nclass) float32."""
    n, nfeat = x.shape
    nhid = w1.shape[0]
    nclass = w2.shape[0]

    if vmem_limit_bytes is None:
        vmem_limit_bytes = _default_vmem_limit_bytes()

    if not isinstance(adj, PreparedAdj):
        if adj_dtype is None:
            # int8 adj stream by default for bf16 compute (halves the dominant
            # HBM stream); keep the exact dtype for f32 validation runs.
            adj_dtype = (jnp.int8
                         if jnp.dtype(compute_dtype) == jnp.dtype(jnp.bfloat16)
                         else compute_dtype)
        adj = prepare_adj(adj, adj_dtype=adj_dtype,
                          vmem_limit_bytes=vmem_limit_bytes)
    assert adj.n == n, "adj was prepared for a different graph size"

    n_p, tile_m, tile_k = adj.n_p, adj.tile_m, adj.tile_k
    nfeat_p = _round_up(nfeat, _LANE)
    nhid_p = _round_up(nhid, _LANE)
    nclass_p = _round_up(nclass, _LANE)

    f32 = jnp.float32
    cdt = jnp.dtype(compute_dtype)
    cbytes = cdt.itemsize
    adj_bytes = jnp.dtype(adj.values.dtype).itemsize
    # Fold the adj dequant factor into both layers' weights/biases so the spmm
    # kernels need no scalar:  (inv*A_q) @ (x @ (inv*W1^T) + inv*b1) == adj @ s1, etc.
    inv = adj.inv_scale

    x_p = _pad2d(jnp.asarray(x, f32), n_p, nfeat_p).astype(cdt)
    w1t_p = (_pad2d(jnp.asarray(w1, f32).T, nfeat_p, nhid_p) * inv).astype(cdt)
    w2t_p = (_pad2d(jnp.asarray(w2, f32).T, nhid_p, nclass_p) * inv).astype(cdt)
    b1_p = _pad2d(jnp.asarray(b1, f32).reshape(1, -1), 1, nhid_p) * inv      # f32
    b2_p = _pad2d(jnp.asarray(b2, f32).reshape(1, -1), 1, nclass_p) * inv    # f32

    n_row_tiles = n_p // tile_m
    n_k_tiles = n_p // tile_k
    grid2d = (n_row_tiles, n_k_tiles)

    if rhs_resident is None:
        # Keep support1/support2 fully VMEM-resident when two buffers of the
        # larger one fit in ~1/3 of the limit (essentially always on v5e/v6e,
        # smaller N only on v7x's 64 MiB).  With a single K tile the streaming
        # spec already has a constant block index, i.e. it is resident anyway.
        rhs_resident = (n_k_tiles > 1 and
                        2 * n_p * max(nhid_p, nclass_p) * cbytes
                        <= vmem_limit_bytes // 3)

    cp_1d = pltpu.CompilerParams(
        dimension_semantics=("parallel",), vmem_limit_bytes=vmem_limit_bytes)
    cp_2d = pltpu.CompilerParams(
        dimension_semantics=("parallel", "arbitrary"),
        vmem_limit_bytes=vmem_limit_bytes)

    def rhs_spec(cols):
        if rhs_resident:
            return pl.BlockSpec((n_p, cols), lambda i, k: (0, 0))   # DMA'd once
        return pl.BlockSpec((tile_k, cols), lambda i, k: (k, 0))    # streamed

    # --- layer 1 projection: support1 = x @ (inv*W1^T) + inv*b1 --------------
    support1 = pl.pallas_call(
        _linear_kernel,
        out_shape=jax.ShapeDtypeStruct((n_p, nhid_p), cdt),
        grid=(n_row_tiles,),
        in_specs=[
            pl.BlockSpec((tile_m, nfeat_p), lambda i: (i, 0)),
            pl.BlockSpec((nfeat_p, nhid_p), lambda i: (0, 0)),
            pl.BlockSpec((1, nhid_p), lambda i: (0, 0)),
        ],
        out_specs=pl.BlockSpec((tile_m, nhid_p), lambda i: (i, 0)),
        compiler_params=cp_1d,
    )(x_p, w1t_p, b1_p)

    # --- layer 1 aggregate + layer 2 projection (fused epilogue) -------------
    #   support2 = relu(adj_q @ support1) @ (inv*W2^T) + inv*b2
    rhs1_bytes = n_p * nhid_p * cbytes * (1 if rhs_resident else n_row_tiles)
    ce2 = pl.CostEstimate(
        flops=2 * n_p * n_p * nhid_p + 2 * n_p * nhid_p * nclass_p,
        transcendentals=0,
        bytes_accessed=n_p * n_p * adj_bytes + rhs1_bytes + n_p * nclass_p * cbytes)
    support2 = pl.pallas_call(
        functools.partial(_spmm_fused_kernel, use_relu=use_relu,
                          tile_k=tile_k, rhs_resident=rhs_resident),
        out_shape=jax.ShapeDtypeStruct((n_p, nclass_p), cdt),
        grid=grid2d,
        in_specs=[
            pl.BlockSpec((tile_m, tile_k), lambda i, k: (i, k)),        # adj tile
            rhs_spec(nhid_p),                                           # support1
            pl.BlockSpec((nhid_p, nclass_p), lambda i, k: (0, 0)),      # W2^T
            pl.BlockSpec((1, nclass_p), lambda i, k: (0, 0)),           # b2
        ],
        out_specs=pl.BlockSpec((tile_m, nclass_p), lambda i, k: (i, 0)),
        scratch_shapes=[pltpu.VMEM((tile_m, nhid_p), jnp.float32)],
        compiler_params=cp_2d,
        cost_estimate=ce2,
    )(adj.values, support1, w2t_p, b2_p)

    # --- layer 2 aggregate: out = adj_q @ support2 ----------------------------
    rhs2_bytes = n_p * nclass_p * cbytes * (1 if rhs_resident else n_row_tiles)
    ce3 = pl.CostEstimate(
        flops=2 * n_p * n_p * nclass_p,
        transcendentals=0,
        bytes_accessed=n_p * n_p * adj_bytes + rhs2_bytes + n_p * nclass_p * 4)
    out_p = pl.pallas_call(
        functools.partial(_spmm_kernel, tile_k=tile_k,
                          rhs_resident=rhs_resident),
        out_shape=jax.ShapeDtypeStruct((n_p, nclass_p), jnp.float32),
        grid=grid2d,
        in_specs=[
            pl.BlockSpec((tile_m, tile_k), lambda i, k: (i, k)),        # adj tile
            rhs_spec(nclass_p),                                         # support2
        ],
        out_specs=pl.BlockSpec((tile_m, nclass_p), lambda i, k: (i, 0)),
        scratch_shapes=[pltpu.VMEM((tile_m, nclass_p), jnp.float32)],
        compiler_params=cp_2d,
        cost_estimate=ce3,
    )(adj.values, support2)

    return out_p[:n, :nclass]


# ------------------------------- test helpers ---------------------------------


def init_gcn_params(key, nfeat, nhid, nclass):
    """Mirror GraphConvolution.init: uniform(-stdv, stdv), stdv = 1/sqrt(fan_in)."""
    k1, k2, k3, k4 = jax.random.split(key, 4)
    stdv1 = 1.0 / math.sqrt(nfeat)
    stdv2 = 1.0 / math.sqrt(nhid)
    w1 = jax.random.uniform(k1, (nhid, nfeat), jnp.float32, -stdv1, stdv1)
    b1 = jax.random.uniform(k2, (nhid,), jnp.float32, -stdv1, stdv1)
    w2 = jax.random.uniform(k3, (nclass, nhid), jnp.float32, -stdv2, stdv2)
    b2 = jax.random.uniform(k4, (nclass,), jnp.float32, -stdv2, stdv2)
    return w1, b1, w2, b2


def _reference(x, adj, w1, b1, w2, b2, use_relu=True):
    hp = jax.lax.Precision.HIGHEST
    s1 = jnp.dot(x, w1.T, precision=hp) + b1
    h = jnp.dot(adj, s1, precision=hp)
    if use_relu:
        h = jnp.maximum(h, 0.0)
    s2 = jnp.dot(h, w2.T, precision=hp) + b2
    return jnp.dot(adj, s2, precision=hp)


def _random_adj(key, n, thresh):
    """Symmetric, row-normalized adjacency with self-loops (usual dense GCN form)."""
    a = (jax.random.uniform(key, (n, n)) > thresh).astype(jnp.float32)
    a = jnp.maximum(a, a.T) + jnp.eye(n, dtype=jnp.float32)
    return a / jnp.sum(a, axis=1, keepdims=True)


if __name__ == "__main__":
    key = jax.random.PRNGKey(0)
    k_x, k_adj, k_par, k_x2, k_adj2 = jax.random.split(key, 5)

    NFEAT, NHID, NCLASS = 16, 32, 4
    w1, b1, w2, b2 = init_gcn_params(k_par, NFEAT, NHID, NCLASS)

    def check(name, out, ref, atol, rtol):
        jax.block_until_ready(out)
        assert out.shape == ref.shape, (name, out.shape, ref.shape)
        err = float(jnp.max(jnp.abs(out - ref)))
        assert jnp.allclose(out, ref, atol=atol, rtol=rtol), (name, err)

    # -- tiny graph: single-tile path ------------------------------------------
    N1 = 8
    x1 = jax.random.normal(k_x, (N1, NFEAT), jnp.float32)
    adj1 = _random_adj(k_adj, N1, 0.6)
    ref1 = _reference(x1, adj1, w1, b1, w2, b2)

    # default production path: bf16 compute, int8 adj stream
    check("tiny/bf16+int8", gcn_forward(x1, adj1, w1, b1, w2, b2),
          ref1, 3e-2, 3e-2)
    # exact-dtype path for a tight structural check
    check("tiny/f32", gcn_forward(x1, adj1, w1, b1, w2, b2,
                                  compute_dtype=jnp.float32),
          ref1, 2e-4, 2e-4)

    # -- larger graph: multi-tile K reduction, resident + streaming RHS --------
    N2 = 384
    x2 = jax.random.normal(k_x2, (N2, NFEAT), jnp.float32)
    adj2 = _random_adj(k_adj2, N2, 0.9)
    ref2 = _reference(x2, adj2, w1, b1, w2, b2)

    prep_f32 = prepare_adj(adj2, adj_dtype=jnp.float32, tile_m=128, tile_k=128)
    check("big/f32/resident",
          gcn_forward(x2, prep_f32, w1, b1, w2, b2, compute_dtype=jnp.float32,
                      rhs_resident=True), ref2, 1e-3, 1e-3)
    check("big/f32/streaming",
          gcn_forward(x2, prep_f32, w1, b1, w2, b2, compute_dtype=jnp.float32,
                      rhs_resident=False), ref2, 1e-3, 1e-3)

    # prepared int8 adj built once and reused across calls (hoisted pad/quant)
    prep_i8 = prepare_adj(adj2, tile_m=128, tile_k=128)
    out_a = gcn_forward(x2, prep_i8, w1, b1, w2, b2)
    out_b = gcn_forward(x2, prep_i8, w1, b1, w2, b2)
    check("big/bf16+int8", out_a, ref2, 3e-2, 3e-2)
    assert jnp.array_equal(out_a, out_b)

    print("KERNEL_OK")
</pallas_src>

<mosaic_0001>
module attributes {stable_mosaic.version = 11 : i64} {
  func.func @_linear_kernel(%arg0: i32, %arg1: memref<128x128xbf16, #tpu.memory_space<vmem>>, %arg2: memref<128x128xbf16, #tpu.memory_space<vmem>>, %arg3: memref<1x128xf32, #tpu.memory_space<vmem>>, %arg4: memref<128x128xbf16, #tpu.memory_space<vmem>>) attributes {dimension_semantics = [#tpu.dimension_semantics<parallel>], iteration_bounds = array<i64: 1>, scalar_prefetch = 0 : i64, scratch_operands = 0 : i64, tpu.core_type = #tpu.core_type<tc>, window_params = [{transform_indices = @transform_0, window_bounds = array<i64: 128, 128>}, {pipeline_mode = #tpu.pipeline_mode<synchronous>, transform_indices = @transform_1, window_bounds = array<i64: 128, 128>}, {pipeline_mode = #tpu.pipeline_mode<synchronous>, transform_indices = @transform_2, window_bounds = array<i64: 1, 128>}, {transform_indices = @transform_3, window_bounds = array<i64: 128, 128>}]} {
    %c0 = arith.constant 0 : index
    %c0_0 = arith.constant 0 : index
    %0 = vector.load %arg1[%c0, %c0_0] : memref<128x128xbf16, #tpu.memory_space<vmem>>, vector<128x128xbf16>
    %c0_1 = arith.constant 0 : index
    %c0_2 = arith.constant 0 : index
    %1 = vector.load %arg2[%c0_1, %c0_2] : memref<128x128xbf16, #tpu.memory_space<vmem>>, vector<128x128xbf16>
    %cst = arith.constant dense<0.000000e+00> : vector<128x128xf32>
    %2 = tpu.matmul %0, %1, %cst {dimension_numbers = #tpu.dot_dimension_numbers<[1], [0], [0], [1], [0, 0, 1, 1], [], []>} : vector<128x128xbf16>, vector<128x128xbf16>, vector<128x128xf32> -> vector<128x128xf32>
    %c0_3 = arith.constant 0 : index
    %c0_4 = arith.constant 0 : index
    %3 = vector.load %arg3[%c0_3, %c0_4] : memref<1x128xf32, #tpu.memory_space<vmem>>, vector<1x128xf32>
    %4 = vector.broadcast %3 : vector<1x128xf32> to vector<128x128xf32>
    %5 = arith.addf %2, %4 : vector<128x128xf32>
    %6 = arith.truncf %5 : vector<128x128xf32> to vector<128x128xbf16>
    %c0_5 = arith.constant 0 : index
    %c0_6 = arith.constant 0 : index
    %7 = vector.load %arg4[%c0_5, %c0_6] : memref<128x128xbf16, #tpu.memory_space<vmem>>, vector<128x128xbf16>
    tpu.vector_store %arg4[%c0_5, %c0_6], %6 {strides = array<i32>} : memref<128x128xbf16, #tpu.memory_space<vmem>>, vector<128x128xbf16>,
    return
  }
  func.func @transform_0(%arg0: i32) -> (i32, i32) {
    %c0_i32 = arith.constant 0 : i32
    %c0_i32_0 = arith.constant 0 : i32
    return %arg0, %c0_i32 : i32, i32
  }
  func.func @transform_1(%arg0: i32) -> (i32, i32) {
    %c0_i32 = arith.constant 0 : i32
    %c0_i32_0 = arith.constant 0 : i32
    %c0_i32_1 = arith.constant 0 : i32
    return %c0_i32, %c0_i32_0 : i32, i32
  }
  func.func @transform_2(%arg0: i32) -> (i32, i32) {
    %c0_i32 = arith.constant 0 : i32
    %c0_i32_0 = arith.constant 0 : i32
    %c0_i32_1 = arith.constant 0 : i32
    return %c0_i32, %c0_i32_0 : i32, i32
  }
  func.func @transform_3(%arg0: i32) -> (i32, i32) {
    %c0_i32 = arith.constant 0 : i32
    %c0_i32_0 = arith.constant 0 : i32
    return %arg0, %c0_i32 : i32, i32
  }
}

</mosaic_0001>

<llo_original>
// kernel: tpu_custom_call.1
$region0: #{tpu_custom_call.1}
  #allocation0 [shape = 'u32[]', space=smem, size = 0x4, offset = 0x4, fixed_abs, tag = 'smem constant byte address 0x4 - core index']
  #allocation1 [shape = 'u32[144,128]{1,0:T(1,128)}', space=vmem, size = 0x12000, scoped, tag = 'internal scratch']
  %s0 = inlined_call_operand.hbm [shape: bf16[128,128], index: 0, kind: input, shape index: {}]
  %s1 = inlined_call_operand.hbm [shape: bf16[128,128], index: 1, kind: input, shape index: {}]
  %s2 = inlined_call_operand.vmem [shape: f32[1,128], index: 2, kind: input, shape index: {}]
  %s3 = inlined_call_operand.hbm [shape: bf16[128,128], index: 3, kind: output, shape index: {}]
  %s4 = sld [smem:[#allocation0]]
  $region30: #{tpu_custom_call.1} parent=0
    _
  %s6 = ssub.s32 1, %s4
  %s7 = scalar_select 0, %s6, %s4
  $region1: #{tpu_custom_call.1} parent=0
    #allocation2 [shape = 'u8[32768]{0}', space=vmem, size = 0x8000, scoped, tag = 'input window, operand 0, single buffered']
    #allocation3 [shape = 's32[1]{0}', space=sflag, size = 0x4, scoped, tag = 'scoped memory for tpu_custom_call.1']
    #allocation4 [shape = 's32[1]{0}', space=sflag, size = 0x4, scoped, tag = 'scoped memory for tpu_custom_call.1']
    #allocation5 [shape = 'u8[32768]{0}', space=vmem, size = 0x8000, scoped, tag = 'input window, operand 1, single buffered']
    #allocation6 [shape = 's32[1]{0}', space=sflag, size = 0x4, scoped, tag = 'scoped memory for tpu_custom_call.1']
    #allocation7 [shape = 'u8[32768]{0}', space=vmem, size = 0x8000, scoped, tag = 'output window, operand 0, single buffered']
    %8 = vsyncpa [#allocation3], 0
    %9 = vsyncpa [#allocation6], 0
    %10 = vsyncpa [#allocation4], 0
    // Predicated region
    $region2: #{tpu_custom_call.1} parent=1 // pred_check
      _
    $region3: #{tpu_custom_call.1} parent=1 // pred_check_branch
      %12 = sbr.rel (0) target = $region5
    $region4: #{tpu_custom_call.1} parent=1 // pred_region
      %s14 = ssub.s32 1024, 1024
      %15 = vsyncadd [#allocation3], %s14
      %s16 = sshll.u32 [#allocation2], 4
      %s17 = int_to_ptr.vmem [resolvable:$true] %s16
      %22 = dma.hbm_to_vmem [thread:$0]  %s0, 1024, %s17, [#allocation3], 64, 64, 4
    $region5: #{tpu_custom_call.1} parent=1 // pred_fallthru
      _
    // Predicated region
    $region6: #{tpu_custom_call.1} parent=1 // pred_check
      _
    $region7: #{tpu_custom_call.1} parent=1 // pred_check_branch
      %24 = sbr.rel (0) target = $region9
    $region8: #{tpu_custom_call.1} parent=1 // pred_region
      %s26 = ssub.s32 1024, 1024
      %27 = vsyncadd [#allocation6], %s26
      %s28 = sshll.u32 [#allocation5], 4
      %s29 = int_to_ptr.vmem [resolvable:$true] %s28
      %34 = dma.hbm_to_vmem [thread:$0]  %s1, 1024, %s29, [#allocation6], 64, 64, 4
    $region9: #{tpu_custom_call.1} parent=1 // pred_fallthru
      _
    // Predicated region
    $region10: #{tpu_custom_call.1} parent=1 // pred_check
      _
    $region11: #{tpu_custom_call.1} parent=1 // pred_check_branch
      %36 = sbr.rel (0) target = $region13
    $region12: #{tpu_custom_call.1} parent=1 // pred_region
      _
    $region13: #{tpu_custom_call.1} parent=1 // pred_fallthru
      _
    // Predicated region
    $region14: #{tpu_custom_call.1} parent=1 // pred_check
      _
    $region15: #{tpu_custom_call.1} parent=1 // pred_check_branch
      %38 = sbr.rel (0) target = $region17
    $region16: #{tpu_custom_call.1} parent=1 // pred_region
      %39 = dma.done [#allocation3], 1024
    $region17: #{tpu_custom_call.1} parent=1 // pred_fallthru
      _
    // Predicated region
    $region18: #{tpu_custom_call.1} parent=1 // pred_check
      _
    $region19: #{tpu_custom_call.1} parent=1 // pred_check_branch
      %41 = sbr.rel (0) target = $region21
    $region20: #{tpu_custom_call.1} parent=1 // pred_region
      %42 = dma.done [#allocation6], 1024
    $region21: #{tpu_custom_call.1} parent=1 // pred_fallthru
      _
    %v44 = vld [vmem:[#allocation2] sm:$0xf]
    %v45 = vld [vmem:[#allocation2 + $0x4] sm:$0xf]
    %v46 = vld [vmem:[#allocation2 + $0x8] sm:$0xf]
    %v47 = vld [vmem:[#allocation2 + $0xc] sm:$0xf]
    %v48 = vld [vmem:[#allocation2 + $0x10] sm:$0xf]
    %v49 = vld [vmem:[#allocation2 + $0x14] sm:$0xf]
    %v50 = vld [vmem:[#allocation2 + $0x18] sm:$0xf]
    %v51 = vld [vmem:[#allocation2 + $0x1c] sm:$0xf]
    %v52 = vld [vmem:[#allocation2 + $0x20] sm:$0xf]
    %v53 = vld [vmem:[#allocation2 + $0x24] sm:$0xf]
    %v54 = vld [vmem:[#allocation2 + $0x28] sm:$0xf]
    %v55 = vld [vmem:[#allocation2 + $0x2c] sm:$0xf]
    %v56 = vld [vmem:[#allocation2 + $0x30] sm:$0xf]
    %v57 = vld [vmem:[#allocation2 + $0x34] sm:$0xf]
    %v58 = vld [vmem:[#allocation2 + $0x38] sm:$0xf]
    %v59 = vld [vmem:[#allocation2 + $0x3c] sm:$0xf]
    %v60 = vld [vmem:[#allocation5] sm:$0xf]
    %v61 = vld [vmem:[#allocation5 + $0x4] sm:$0xf]
    %v62 = vld [vmem:[#allocation5 + $0x8] sm:$0xf]
    %v63 = vld [vmem:[#allocation5 + $0xc] sm:$0xf]
    %v64 = vld [vmem:[#allocation5 + $0x10] sm:$0xf]
    %v65 = vld [vmem:[#allocation5 + $0x14] sm:$0xf]
    %v66 = vld [vmem:[#allocation5 + $0x18] sm:$0xf]
    %v67 = vld [vmem:[#allocation5 + $0x1c] sm:$0xf]
    %v68 = vld [vmem:[#allocation5 + $0x20] sm:$0xf]
    %v69 = vld [vmem:[#allocation5 + $0x24] sm:$0xf]
    %v70 = vld [vmem:[#allocation5 + $0x28] sm:$0xf]
    %v71 = vld [vmem:[#allocation5 + $0x2c] sm:$0xf]
    %v72 = vld [vmem:[#allocation5 + $0x30] sm:$0xf]
    %v73 = vld [vmem:[#allocation5 + $0x34] sm:$0xf]
    %v74 = vld [vmem:[#allocation5 + $0x38] sm:$0xf]
    %v75 = vld [vmem:[#allocation5 + $0x3c] sm:$0xf]
    %v76 = vld [vmem:[%s2] sm:$0x1]
    %v78 = vlaneseq
    %v79 = vshrl.u32 %v78, 7
    %v80 = vsub.s32 0, %v79
    %v81 = vrot.slane %v76, %v80
    %v99 = vunpack.c.l.b16 %v44
    %v100 = vunpack.c.l.b16 %v45
    %v101 = vunpack.c.l.b16 %v46
    %v102 = vunpack.c.l.b16 %v47
    %v103 = vunpack.c.l.b16 %v48
    %v104 = vunpack.c.l.b16 %v49
    %v105 = vunpack.c.l.b16 %v50
    %v106 = vunpack.c.l.b16 %v51
    %v107 = vunpack.c.l.b16 %v52
    %v108 = vunpack.c.l.b16 %v53
    %v109 = vunpack.c.l.b16 %v54
    %v110 = vunpack.c.l.b16 %v55
    %v111 = vunpack.c.l.b16 %v56
    %v112 = vunpack.c.l.b16 %v57
    %v113 = vunpack.c.l.b16 %v58
    %v114 = vunpack.c.l.b16 %v59
    %v115 = vpack.c.b16 %v100, %v99
    %v116 = vpack.c.b16 %v102, %v101
    %v117 = vpack.c.b16 %v104, %v103
    %v118 = vpack.c.b16 %v106, %v105
    %v119 = vpack.c.b16 %v108, %v107
    %v120 = vpack.c.b16 %v110, %v109
    %v121 = vpack.c.b16 %v112, %v111
    %v122 = vpack.c.b16 %v114, %v113
    %v147 = vunpack.c.l.b16 %v60
    %v148 = vunpack.c.l.b16 %v61
    %v149 = vunpack.c.l.b16 %v62
    %v150 = vunpack.c.l.b16 %v63
    %v151 = vunpack.c.l.b16 %v64
    %v152 = vunpack.c.l.b16 %v65
    %v153 = vunpack.c.l.b16 %v66
    %v154 = vunpack.c.l.b16 %v67
    %v155 = vunpack.c.l.b16 %v68
    %v156 = vunpack.c.l.b16 %v69
    %v157 = vunpack.c.l.b16 %v70
    %v158 = vunpack.c.l.b16 %v71
    %v159 = vunpack.c.l.b16 %v72
    %v160 = vunpack.c.l.b16 %v73
    %v161 = vunpack.c.l.b16 %v74
    %v162 = vunpack.c.l.b16 %v75
    %v163 = vpack.c.b16 %v148, %v147
    %v164 = vpack.c.b16 %v150, %v149
    %v165 = vpack.c.b16 %v152, %v151
    %v166 = vpack.c.b16 %v154, %v153
    %v167 = vpack.c.b16 %v156, %v155
    %v168 = vpack.c.b16 %v158, %v157
    %v169 = vpack.c.b16 %v160, %v159
    %v170 = vpack.c.b16 %v162, %v161
    %179 = vmatprep.subr.bf16.mxu0 0
    %180 = vmatpush1.bf16.msra.mxu0 %v170
    %181 = vmatprep.subr.bf16.mxu0 0
    %182 = vmatpush1.bf16.msra.mxu0 %v169
    %183 = vmatprep.subr.bf16.mxu0 0
    %184 = vmatpush1.bf16.msra.mxu0 %v168
    %185 = vmatprep.subr.bf16.mxu0 0
    %186 = vmatpush1.bf16.msra.mxu0 %v167
    %187 = vmatprep.subr.bf16.mxu0 0
    %188 = vmatpush1.bf16.msra.mxu0 %v166
    %189 = vmatprep.subr.bf16.mxu0 0
    %190 = vmatpush1.bf16.msra.mxu0 %v165
    %191 = vmatprep.subr.bf16.mxu0 0
    %192 = vmatpush1.bf16.msra.mxu0 %v164
    %193 = vmatprep.subr.bf16.mxu0 0
    %194 = vmatpush1.bf16.msra.mxu0 %v163
    %195 = vmatprep.subr.bf16.mxu0 0
    %196 = vmatpush2.bf16.msra.mxu0 0
    %197 = vmatprep.subr.bf16.mxu0 0
    %198 = vmatpush2.bf16.msra.mxu0 0
    %199 = vmatprep.subr.bf16.mxu0 0
    %200 = vmatpush2.bf16.msra.mxu0 0
    %201 = vmatprep.subr.bf16.mxu0 0
    %202 = vmatpush2.bf16.msra.mxu0 0
    %203 = vmatprep.subr.bf16.mxu0 0
    %204 = vmatpush2.bf16.msra.mxu0 0
    %205 = vmatprep.subr.bf16.mxu0 0
    %206 = vmatpush2.bf16.msra.mxu0 0
    %207 = vmatprep.subr.bf16.mxu0 0
    %208 = vmatpush2.bf16.msra.mxu0 0
    %209 = vmatprep.subr.bf16.mxu0 0
    %210 = vmatpush2.bf16.msra.mxu0 0
    %211 = vmatprep.mubr.bf16.mxu0 0
    %212 = vmatmul.mubr.bf16.gmra.mxu0 %v115
    %v213 = vpop.f32.mrf.mxu0
    %v214 = vadd.f32 %v81, %v213
    %v215 = vpop.f32.mrf.mxu0
    %v216 = vpop.f32.mrf.mxu0
    %v217 = vadd.f32 %v81, %v216
    %v218 = vpop.f32.mrf.mxu0
    %219 = vmatprep.mubr.bf16.mxu0 0
    %220 = vmatmul.mubr.bf16.gmra.mxu0 %v116
    %v221 = vpop.f32.mrf.mxu0
    %v222 = vadd.f32 %v81, %v221
    %v223 = vpop.f32.mrf.mxu0
    %v224 = vpop.f32.mrf.mxu0
    %v225 = vadd.f32 %v81, %v224
    %v226 = vpop.f32.mrf.mxu0
    %227 = vmatprep.mubr.bf16.mxu0 0
    %228 = vmatmul.mubr.bf16.gmra.mxu0 %v117
    %v229 = vpop.f32.mrf.mxu0
    %v230 = vadd.f32 %v81, %v229
    %v231 = vpop.f32.mrf.mxu0
    %v232 = vpop.f32.mrf.mxu0
    %v233 = vadd.f32 %v81, %v232
    %v234 = vpop.f32.mrf.mxu0
    %235 = vmatprep.mubr.bf16.mxu0 0
    %236 = vmatmul.mubr.bf16.gmra.mxu0 %v118
    %v237 = vpop.f32.mrf.mxu0
    %v238 = vadd.f32 %v81, %v237
    %v239 = vpop.f32.mrf.mxu0
    %v240 = vpop.f32.mrf.mxu0
    %v241 = vadd.f32 %v81, %v240
    %v242 = vpop.f32.mrf.mxu0
    %243 = vmatprep.mubr.bf16.mxu0 0
    %244 = vmatmul.mubr.bf16.gmra.mxu0 %v119
    %v245 = vpop.f32.mrf.mxu0
    %v246 = vadd.f32 %v81, %v245
    %v247 = vpop.f32.mrf.mxu0
    %v248 = vpop.f32.mrf.mxu0
    %v249 = vadd.f32 %v81, %v248
    %v250 = vpop.f32.mrf.mxu0
    %251 = vmatprep.mubr.bf16.mxu0 0
    %252 = vmatmul.mubr.bf16.gmra.mxu0 %v120
    %v253 = vpop.f32.mrf.mxu0
    %v254 = vadd.f32 %v81, %v253
    %v255 = vpop.f32.mrf.mxu0
    %v256 = vpop.f32.mrf.mxu0
    %v257 = vadd.f32 %v81, %v256
    %v258 = vpop.f32.mrf.mxu0
    %259 = vmatprep.mubr.bf16.mxu0 0
    %260 = vmatmul.mubr.bf16.gmra.mxu0 %v121
    %v261 = vpop.f32.mrf.mxu0
    %v262 = vadd.f32 %v81, %v261
    %v263 = vpop.f32.mrf.mxu0
    %v264 = vpop.f32.mrf.mxu0
    %v265 = vadd.f32 %v81, %v264
    %v266 = vpop.f32.mrf.mxu0
    %267 = vmatprep.mubr.bf16.mxu0 0
    %268 = vmatmul.mubr.bf16.gmra.mxu0 %v122
    %v269 = vpop.f32.mrf.mxu0
    %v270 = vadd.f32 %v81, %v269
    %v271 = vpop.f32.mrf.mxu0
    %v272 = vpop.f32.mrf.mxu0
    %v273 = vadd.f32 %v81, %v272
    %v274 = vpop.f32.mrf.mxu0
    %275 = vdwg.mxu0
    %v276 = vpack.c.bf16 %v217, %v214
    %v277 = vpack.c.bf16 %v225, %v222
    %v278 = vpack.c.bf16 %v233, %v230
    %v279 = vpack.c.bf16 %v241, %v238
    %v280 = vpack.c.bf16 %v249, %v246
    %v281 = vpack.c.bf16 %v257, %v254
    %v282 = vpack.c.bf16 %v265, %v262
    %v283 = vpack.c.bf16 %v273, %v270
    %v292 = vunpack.c.l.b16 %v276
    %v293 = vunpack.c.h.b16 %v276
    %v294 = vunpack.c.l.b16 %v277
    %v295 = vunpack.c.h.b16 %v277
    %v296 = vunpack.c.l.b16 %v278
    %v297 = vunpack.c.h.b16 %v278
    %v298 = vunpack.c.l.b16 %v279
    %v299 = vunpack.c.h.b16 %v279
    %v300 = vunpack.c.l.b16 %v280
    %v301 = vunpack.c.h.b16 %v280
    %v302 = vunpack.c.l.b16 %v281
    %v303 = vunpack.c.h.b16 %v281
    %v304 = vunpack.c.l.b16 %v282
    %v305 = vunpack.c.h.b16 %v282
    %v306 = vunpack.c.l.b16 %v283
    %v307 = vunpack.c.h.b16 %v283
    %v308 = vpack.c.b16 %v292, %v292
    %v309 = vpack.c.b16 %v293, %v293
    %v310 = vpack.c.b16 %v294, %v294
    %v311 = vpack.c.b16 %v295, %v295
    %v312 = vpack.c.b16 %v296, %v296
    %v313 = vpack.c.b16 %v297, %v297
    %v314 = vpack.c.b16 %v298, %v298
    %v315 = vpack.c.b16 %v299, %v299
    %v316 = vpack.c.b16 %v300, %v300
    %v317 = vpack.c.b16 %v301, %v301
    %v318 = vpack.c.b16 %v302, %v302
    %v319 = vpack.c.b16 %v303, %v303
    %v320 = vpack.c.b16 %v304, %v304
    %v321 = vpack.c.b16 %v305, %v305
    %v322 = vpack.c.b16 %v306, %v306
    %v323 = vpack.c.b16 %v307, %v307
    %340 = vst [vmem:[#allocation7] sm:$0xf] %v308
    %341 = vst [vmem:[#allocation7 + $0x4] sm:$0xf] %v309
    %342 = vst [vmem:[#allocation7 + $0x8] sm:$0xf] %v310
    %343 = vst [vmem:[#allocation7 + $0xc] sm:$0xf] %v311
    %344 = vst [vmem:[#allocation7 + $0x10] sm:$0xf] %v312
    %345 = vst [vmem:[#allocation7 + $0x14] sm:$0xf] %v313
    %346 = vst [vmem:[#allocation7 + $0x18] sm:$0xf] %v314
    %347 = vst [vmem:[#allocation7 + $0x1c] sm:$0xf] %v315
    %348 = vst [vmem:[#allocation7 + $0x20] sm:$0xf] %v316
    %349 = vst [vmem:[#allocation7 + $0x24] sm:$0xf] %v317
    %350 = vst [vmem:[#allocation7 + $0x28] sm:$0xf] %v318
    %351 = vst [vmem:[#allocation7 + $0x2c] sm:$0xf] %v319
    %352 = vst [vmem:[#allocation7 + $0x30] sm:$0xf] %v320
    %353 = vst [vmem:[#allocation7 + $0x34] sm:$0xf] %v321
    %354 = vst [vmem:[#allocation7 + $0x38] sm:$0xf] %v322
    %355 = vst [vmem:[#allocation7 + $0x3c] sm:$0xf] %v323
    // Predicated region
    $region22: #{tpu_custom_call.1} parent=1 // pred_check
      _
    $region23: #{tpu_custom_call.1} parent=1 // pred_check_branch
      %357 = sbr.rel (0) target = $region25
    $region24: #{tpu_custom_call.1} parent=1 // pred_region
      %s359 = ssub.s32 1024, 1024
      %360 = vsyncadd [#allocation4], %s359
      %s361 = sshll.u32 [#allocation7], 4
      %s362 = int_to_ptr.vmem [resolvable:$true] %s361
      %367 = dma.vmem_to_hbm [thread:$0]  %s362, 1024, %s3, [#allocation4], 64, 64, 4
    $region25: #{tpu_custom_call.1} parent=1 // pred_fallthru
      _
    // Predicated region
    $region26: #{tpu_custom_call.1} parent=1 // pred_check
      _
    $region27: #{tpu_custom_call.1} parent=1 // pred_check_branch
      %369 = sbr.rel (0) target = $region29
    $region28: #{tpu_custom_call.1} parent=1 // pred_region
      %370 = dma.done [#allocation4], 1024
    $region29: #{tpu_custom_call.1} parent=1 // pred_fallthru
      _
    %371 = vsyncpa [#allocation3], 1
    %372 = vsyncpa [#allocation6], 1
    %373 = vsyncpa [#allocation4], 1

</llo_original>
